<compile_context>
chip_gen: v6e
topology: v6e:2x2x1
jax: 0.10.0
libtpu: 0.0.40
codegen_flags: <defaults>
</compile_context>

<pallas_src>
import functools

import jax
import jax.numpy as jnp
from jax import lax
from jax.experimental import pallas as pl
from jax.experimental.pallas import tpu as pltpu

_IGNORE_INDEX = -100  # PyTorch nn.CrossEntropyLoss default


def _ce_kernel(preds_ref, targets_ref, out_ref, *, n_rows, tile_rows):
    """Per-tile cross-entropy partial sums.

    preds_ref:   (TN, C)     logits, native dtype (cast to f32 here)
    targets_ref: (TN, 1)     int32 class indices
    out_ref:     (1, 8, 128) f32; sublane 0 = sum of per-row losses,
                             sublane 1 = number of valid rows in this tile.
    """
    i = pl.program_id(0)

    logits = preds_ref[...].astype(jnp.float32)               # (TN, C)
    tgt = targets_ref[...]                                     # (TN, 1) int32
    tn, c = logits.shape

    # Row validity: inside the real batch AND not the ignore_index sentinel.
    row = lax.broadcasted_iota(jnp.int32, (tn, 1), 0) + i * tile_rows
    valid = jnp.logical_and(row < n_rows, tgt != _IGNORE_INDEX)   # (TN, 1) bool

    # Fused pass over `shifted`: log-sum-exp + one-hot target gather.
    m = jnp.max(logits, axis=-1, keepdims=True)                  # (TN, 1)  XLU
    shifted = logits - m                                          # (TN, C)  VPU
    sum_exp = jnp.sum(jnp.exp(shifted), axis=-1, keepdims=True)   # EUP + XLU
    col = lax.broadcasted_iota(jnp.int32, (tn, c), 1)             # (TN, C)
    tgt_shifted = jnp.sum(jnp.where(col == tgt, shifted, 0.0),
                          axis=-1, keepdims=True)                 # (TN, 1)
    per_row = jnp.log(sum_exp) - tgt_shifted                      # = lse - tgt_logit

    per_row = jnp.where(valid, per_row, 0.0)
    tile_sum = jnp.sum(per_row)
    tile_cnt = jnp.sum(valid.astype(jnp.float32))

    sub = lax.broadcasted_iota(jnp.int32, out_ref.shape, 1)       # sublane index
    out_ref[...] = jnp.where(
        sub == 0, tile_sum, jnp.where(sub == 1, tile_cnt, 0.0)
    ).astype(jnp.float32)


def cross_entropy_loss(preds, targets):
    """preds: (N, C) float logits (f32 or bf16); targets: (N,) integer class indices.
    Returns scalar f32 loss (matches nn.CrossEntropyLoss, reduction='mean',
    ignore_index=-100)."""
    n, c = preds.shape
    itemsize = jnp.dtype(preds.dtype).itemsize
    # Sublane granularity for the row tile: 16 for 16-bit dtypes, 8 for 32-bit.
    sub = 16 if itemsize == 2 else 8

    # Keep the double-buffered native-dtype logits block ~<= 4 MiB and <= 1024
    # rows (so f32 intermediates stay well inside scoped VMEM on every
    # generation; v7x has only 64 MiB physical).
    budget_bytes = 4 * 1024 * 1024
    rows_cap = max(sub, (budget_bytes // max(1, c * itemsize)) // sub * sub)
    tn = min(1024, rows_cap)
    if n <= tn:
        tn = n  # a full-extent block is always a legal block shape
    num_tiles = pl.cdiv(n, tn)
    # TODO(synk): for very large vocab (C so big that even a `sub`-row tile
    # exceeds the VMEM budget) also tile the class dimension with an online
    # (flash-style) running max / running sum-exp.

    targets_2d = targets.astype(jnp.int32).reshape(n, 1)

    kernel = functools.partial(_ce_kernel, n_rows=n, tile_rows=tn)

    partials = pl.pallas_call(
        kernel,
        out_shape=jax.ShapeDtypeStruct((num_tiles, 8, 128), jnp.float32),
        grid_spec=pltpu.PrefetchScalarGridSpec(
            num_scalar_prefetch=0,
            grid=(num_tiles,),
            in_specs=[
                pl.BlockSpec((tn, c), lambda i: (i, 0)),
                pl.BlockSpec((tn, 1), lambda i: (i, 0)),
            ],
            out_specs=pl.BlockSpec((1, 8, 128), lambda i: (i, 0, 0)),
        ),
        compiler_params=pltpu.CompilerParams(
            dimension_semantics=("parallel",),
            vmem_limit_bytes=32 * 1024 * 1024,
        ),
    )(preds, targets_2d)

    total = jnp.sum(partials[:, 0, 0])
    count = jnp.sum(partials[:, 1, 0])
    return (total / count).astype(jnp.float32)


if __name__ == "__main__":
    key = jax.random.PRNGKey(0)
    k_preds, k_tgt = jax.random.split(key)

    N, C = 8, 32  # small shapes: batch=8, num_classes=32
    preds = jax.random.normal(k_preds, (N, C), dtype=jnp.float32)
    targets = jax.random.randint(k_tgt, (N,), 0, C, dtype=jnp.int32)

    loss = cross_entropy_loss(preds, targets)
    loss = jax.block_until_ready(loss)

    # reference check against pure-JAX log-softmax cross entropy
    logp = jax.nn.log_softmax(preds.astype(jnp.float32), axis=-1)
    ref = -jnp.mean(logp[jnp.arange(N), targets])
    assert jnp.allclose(loss, ref, atol=1e-5, rtol=1e-5), (loss, ref)

    print("KERNEL_OK")
</pallas_src>

<mosaic_0001>
module attributes {stable_mosaic.version = 11 : i64} {
  func.func @_ce_kernel(%arg0: i32, %arg1: memref<8x32xf32, #tpu.memory_space<vmem>>, %arg2: memref<8x1xi32, #tpu.memory_space<vmem>>, %arg3: memref<1x8x128xf32, #tpu.memory_space<vmem>>) attributes {dimension_semantics = [#tpu.dimension_semantics<parallel>], iteration_bounds = array<i64: 1>, scalar_prefetch = 0 : i64, scratch_operands = 0 : i64, tpu.core_type = #tpu.core_type<tc>, window_params = [{transform_indices = @transform_0, window_bounds = array<i64: 8, 32>}, {transform_indices = @transform_1, window_bounds = array<i64: 8, 1>}, {transform_indices = @transform_2, window_bounds = array<i64: 1, 8, 128>}]} {
    %c0 = arith.constant 0 : index
    %c0_0 = arith.constant 0 : index
    %0 = vector.load %arg1[%c0, %c0_0] : memref<8x32xf32, #tpu.memory_space<vmem>>, vector<8x32xf32>
    %c0_1 = arith.constant 0 : index
    %c0_2 = arith.constant 0 : index
    %1 = vector.load %arg2[%c0_1, %c0_2] : memref<8x1xi32, #tpu.memory_space<vmem>>, vector<8x1xi32>
    %2 = tpu.iota {dimensions = array<i32: 0>} : vector<8x1xi32>
    %c8_i32 = arith.constant 8 : i32
    %3 = arith.muli %arg0, %c8_i32 : i32
    %4 = vector.broadcast %3 : i32 to vector<8x1xi32>
    %5 = arith.addi %2, %4 : vector<8x1xi32>
    %c8_i32_3 = arith.constant 8 : i32
    %6 = vector.broadcast %c8_i32_3 : i32 to vector<8x1xi32>
    %7 = arith.cmpi slt, %5, %6 : vector<8x1xi32>
    %c-100_i32 = arith.constant -100 : i32
    %8 = vector.broadcast %c-100_i32 : i32 to vector<8x1xi32>
    %9 = arith.cmpi ne, %1, %8 : vector<8x1xi32>
    %10 = arith.andi %7, %9 : vector<8x1xi1>
    %cst = arith.constant dense<0xFF800000> : vector<8xf32>
    %11 = vector.multi_reduction <maximumf>, %0, %cst [1] : vector<8x32xf32> to vector<8xf32>
    %12 = vector.shape_cast %11 : vector<8xf32> to vector<8x1xf32>
    %13 = vector.broadcast %12 : vector<8x1xf32> to vector<8x32xf32>
    %14 = arith.subf %0, %13 : vector<8x32xf32>
    %15 = math.exp %14 : vector<8x32xf32>
    %cst_4 = arith.constant dense<0.000000e+00> : vector<8xf32>
    %16 = vector.multi_reduction <add>, %15, %cst_4 [1] : vector<8x32xf32> to vector<8xf32>
    %17 = vector.shape_cast %16 : vector<8xf32> to vector<8x1xf32>
    %18 = tpu.iota {dimensions = array<i32: 1>} : vector<8x32xi32>
    %19 = vector.broadcast %1 : vector<8x1xi32> to vector<8x32xi32>
    %20 = arith.cmpi eq, %18, %19 : vector<8x32xi32>
    %cst_5 = arith.constant 0.000000e+00 : f32
    %21 = vector.broadcast %cst_5 : f32 to vector<8x32xf32>
    %22 = arith.select %20, %14, %21 : vector<8x32xi1>, vector<8x32xf32>
    %cst_6 = arith.constant dense<0.000000e+00> : vector<8xf32>
    %23 = vector.multi_reduction <add>, %22, %cst_6 [1] : vector<8x32xf32> to vector<8xf32>
    %24 = vector.shape_cast %23 : vector<8xf32> to vector<8x1xf32>
    %25 = math.log %17 : vector<8x1xf32>
    %26 = arith.subf %25, %24 : vector<8x1xf32>
    %cst_7 = arith.constant 0.000000e+00 : f32
    %27 = vector.broadcast %cst_7 : f32 to vector<8x1xf32>
    %28 = arith.select %10, %26, %27 : vector<8x1xi1>, vector<8x1xf32>
    %29 = vector.shape_cast %28 : vector<8x1xf32> to vector<1x8x1xf32>
    %cst_8 = arith.constant dense<0.000000e+00> : vector<1xf32>
    %30 = vector.multi_reduction <add>, %29, %cst_8 [1, 2] : vector<1x8x1xf32> to vector<1xf32>
    %31 = vector.shape_cast %30 : vector<1xf32> to vector<1x1x1xf32>
    %32 = vector.extract %31[0, 0, 0] : f32 from vector<1x1x1xf32>
    %33 = arith.extui %10 : vector<8x1xi1> to vector<8x1xi32>
    %34 = arith.sitofp %33 : vector<8x1xi32> to vector<8x1xf32>
    %35 = vector.shape_cast %34 : vector<8x1xf32> to vector<1x8x1xf32>
    %cst_9 = arith.constant dense<0.000000e+00> : vector<1xf32>
    %36 = vector.multi_reduction <add>, %35, %cst_9 [1, 2] : vector<1x8x1xf32> to vector<1xf32>
    %37 = vector.shape_cast %36 : vector<1xf32> to vector<1x1x1xf32>
    %38 = vector.extract %37[0, 0, 0] : f32 from vector<1x1x1xf32>
    %39 = tpu.iota {dimensions = array<i32: 1>} : vector<1x8x128xi32>
    %c0_i32 = arith.constant 0 : i32
    %40 = vector.broadcast %c0_i32 : i32 to vector<1x8x128xi32>
    %41 = arith.cmpi eq, %39, %40 : vector<1x8x128xi32>
    %c1_i32 = arith.constant 1 : i32
    %42 = vector.broadcast %c1_i32 : i32 to vector<1x8x128xi32>
    %43 = arith.cmpi eq, %39, %42 : vector<1x8x128xi32>
    %cst_10 = arith.constant 0.000000e+00 : f32
    %44 = vector.broadcast %38 : f32 to vector<1x8x128xf32>
    %45 = vector.broadcast %cst_10 : f32 to vector<1x8x128xf32>
    %46 = arith.select %43, %44, %45 : vector<1x8x128xi1>, vector<1x8x128xf32>
    %47 = vector.broadcast %32 : f32 to vector<1x8x128xf32>
    %48 = arith.select %41, %47, %46 : vector<1x8x128xi1>, vector<1x8x128xf32>
    %c0_11 = arith.constant 0 : index
    %c0_12 = arith.constant 0 : index
    %c0_13 = arith.constant 0 : index
    %49 = vector.load %arg3[%c0_11, %c0_12, %c0_13] : memref<1x8x128xf32, #tpu.memory_space<vmem>>, vector<1x8x128xf32>
    tpu.vector_store %arg3[%c0_11, %c0_12, %c0_13], %48 {strides = array<i32>} : memref<1x8x128xf32, #tpu.memory_space<vmem>>, vector<1x8x128xf32>,
    return
  }
  func.func @transform_0(%arg0: i32) -> (i32, i32) {
    %c0_i32 = arith.constant 0 : i32
    %c0_i32_0 = arith.constant 0 : i32
    return %arg0, %c0_i32 : i32, i32
  }
  func.func @transform_1(%arg0: i32) -> (i32, i32) {
    %c0_i32 = arith.constant 0 : i32
    %c0_i32_0 = arith.constant 0 : i32
    return %arg0, %c0_i32 : i32, i32
  }
  func.func @transform_2(%arg0: i32) -> (i32, i32, i32) {
    %c0_i32 = arith.constant 0 : i32
    %c0_i32_0 = arith.constant 0 : i32
    %c0_i32_1 = arith.constant 0 : i32
    return %arg0, %c0_i32, %c0_i32_0 : i32, i32, i32
  }
}

</mosaic_0001>

<llo_original>
// kernel: tpu_custom_call.1
$region0: #{tpu_custom_call.1}
  #allocation0 [shape = 'u32[]', space=smem, size = 0x4, offset = 0x4, fixed_abs, tag = 'smem constant byte address 0x4 - core index']
  #allocation1 [shape = 'u32[144,128]{1,0:T(1,128)}', space=vmem, size = 0x12000, scoped, tag = 'internal scratch']
  %s0 = inlined_call_operand.vmem [shape: f32[8,32], index: 0, kind: input, shape index: {}]
  %s1 = inlined_call_operand.vmem [shape: s32[8,1], index: 1, kind: input, shape index: {}]
  %s2 = inlined_call_operand.hbm [shape: f32[1,8,128], index: 2, kind: output, shape index: {}]
  %s3 = sld [smem:[#allocation0]]
  $region18: #{tpu_custom_call.1} parent=0
    _
  %s5 = ssub.s32 1, %s3
  %s6 = scalar_select 0, %s5, %s3
  $region1: #{tpu_custom_call.1} parent=0
    #allocation2 [shape = 'u8[4096]{0}', space=vmem, size = 0x1000, scoped, tag = 'output window, operand 0, single buffered']
    #allocation3 [shape = 's32[1]{0}', space=sflag, size = 0x4, scoped, tag = 'scoped memory for tpu_custom_call.1']
    %7 = vsyncpa [#allocation3], 0
    // Predicated region
    $region2: #{tpu_custom_call.1} parent=1 // pred_check
      _
    $region3: #{tpu_custom_call.1} parent=1 // pred_check_branch
      %9 = sbr.rel (0) target = $region5
    $region4: #{tpu_custom_call.1} parent=1 // pred_region
      _
    $region5: #{tpu_custom_call.1} parent=1 // pred_fallthru
      _
    // Predicated region
    $region6: #{tpu_custom_call.1} parent=1 // pred_check
      _
    $region7: #{tpu_custom_call.1} parent=1 // pred_check_branch
      %11 = sbr.rel (0) target = $region9
    $region8: #{tpu_custom_call.1} parent=1 // pred_region
      _
    $region9: #{tpu_custom_call.1} parent=1 // pred_fallthru
      _
    %v12 = vld [vmem:[%s0] sm:$0xff]
    %v13 = vld [vmem:[%s1] sm:$0xff]
    %v14 = vlaneseq
    %v15 = vshrl.u32 %v14, 7
    %s16 = smul.u32 0, 8
    %v17 = vstv %s16
    %v18 = vadd.s32 %v15, %v17
    %vm19 = vcmp.lt.s32.totalorder %v18, 8
    %vm20 = vcmp.ne.s32.totalorder %v13, 4294967196
    %vm21 = vmand %vm19, %vm20
    %vm22 = vcmask 261120
    %v23 = vsel %vm22, %v12, -inf
    %24 = vmax.xlane.f32.xlu0 %v23
    %v25 = vpop.xlane.xlu0 %24
    %v26 = vsub.f32 %v12, %v25
    %v27 = vmul.f32 %v26, 1.442695
    %v28 = vpow.pop %v27
    %v29 = vsel %vm22, %v28, 0.0
    %30 = vadd.xlane.f32.xlu0 %v29
    %v31 = vpop.xlane.xlu0 %30
    %v32 = vlaneseq
    %v33 = vand.u32 %v32, 127
    %34 = vset.pattern.permute.xlu0 0
    %35 = vperm.xlu0 %34, %v13
    %v36 = vpop.permute.xlu0 %35
    %vm37 = vcmp.eq.s32.totalorder %v33, %v36
    %v38 = vsel %vm37, %v26, 0.0
    %v39 = vsel %vm22, %v38, 0.0
    %40 = vadd.xlane.f32.xlu0 %v39
    %v41 = vpop.xlane.xlu0 %40
    %v42 = vlog2.pop %v31
    %v43 = vmul.f32 %v42, 0.6931472
    %v44 = vsub.f32 %v43, %v41
    %v45 = vsel %vm21, %v44, 0.0
    %vm46 = vcmask 7168
    %v47 = vsel %vm46, %v45, 0.0
    %48 = vadd.xlane.f32.xlu0 %v47
    %v49 = vpop.xlane.xlu0 %48
    %v50 = vrot.slane %v49, 4
    %v51 = vadd.f32 %v49, %v50
    %v52 = vrot.slane %v51, 2
    %v53 = vadd.f32 %v51, %v52
    %v54 = vrot.slane %v53, 1
    %v55 = vadd.f32 %v53, %v54
    %s56 = vtos %v55
    %v57 = vsel %vm21, 1, 0
    %v58 = vcvt.s32.f32 %v57
    %v59 = vsel %vm46, %v58, 0.0
    %60 = vadd.xlane.f32.xlu0 %v59
    %v61 = vpop.xlane.xlu0 %60
    %v62 = vrot.slane %v61, 4
    %v63 = vadd.f32 %v61, %v62
    %v64 = vrot.slane %v63, 2
    %v65 = vadd.f32 %v63, %v64
    %v66 = vrot.slane %v65, 1
    %v67 = vadd.f32 %v65, %v66
    %s68 = vtos %v67
    %vm69 = vcmp.eq.s32.totalorder %v15, 0
    %vm70 = vcmp.eq.s32.totalorder %v15, 1
    %v71 = vstv %s68
    %v72 = vsel %vm70, %v71, 0.0
    %v73 = vstv %s56
    %v74 = vsel %vm69, %v73, %v72
    %75 = vst [vmem:[#allocation2] sm:$0xff] %v74
    // Predicated region
    $region10: #{tpu_custom_call.1} parent=1 // pred_check
      _
    $region11: #{tpu_custom_call.1} parent=1 // pred_check_branch
      %77 = sbr.rel (0) target = $region13
    $region12: #{tpu_custom_call.1} parent=1 // pred_region
      %s79 = ssub.s32 128, 128
      %80 = vsyncadd [#allocation3], %s79
      %s82 = sshll.u32 [#allocation2], 4
      %s83 = int_to_ptr.vmem [resolvable:$true] %s82
      %85 = dma.vmem_to_hbm [thread:$0]  %s83, 128, %s2, [#allocation3]
    $region13: #{tpu_custom_call.1} parent=1 // pred_fallthru
      _
    // Predicated region
    $region14: #{tpu_custom_call.1} parent=1 // pred_check
      _
    $region15: #{tpu_custom_call.1} parent=1 // pred_check_branch
      %87 = sbr.rel (0) target = $region17
    $region16: #{tpu_custom_call.1} parent=1 // pred_region
      %88 = dma.done [#allocation3], 128
    $region17: #{tpu_custom_call.1} parent=1 // pred_fallthru
      _
    %89 = vsyncpa [#allocation3], 1

</llo_original>
